<compile_context>
chip_gen: v7x
topology: tpu7x:2x2x1
jax: 0.10.0
libtpu: 0.0.40
codegen_flags: <defaults>
</compile_context>

<pallas_src>
import functools
import math

import jax
import jax.numpy as jnp
from jax import lax
from jax.experimental import pallas as pl
from jax.experimental.pallas import tpu as pltpu


# ----------------------------- Pallas kernel --------------------------------
def _dsconv2d_kernel(ph_ref, w_ref, b_ref, o_ref, slab_ref, *,
                     kh, kw, sh, sw, dh, dw, oh, ow, groups, cg, ocg,
                     row_tile):
    """Fused im2col + single-contraction conv for one batch image.

    ph_ref  : (1, sh*sw, Hph, Wph, Cin)   stride-phase decomposed padded input
    w_ref   : (groups, OCg, KH*KW*Cg)     weight, K ordered as (i, j, c)
    b_ref   : (Cout, 1)                   bias column, f32
    o_ref   : (1, Cout, OH*OW)            channel-major output (NCHW-flat)
    slab_ref: (row_tile*OW, KH*KW*Cg)     VMEM scratch for the patch slab
    """
    ktot = kh * kw * cg
    del ktot  # (kept for readability; shapes are static)

    for g in range(groups):                              # static; usually 1
        ch0, oc0 = g * cg, g * ocg
        for rs in range(0, oh, row_tile):                # static M row chunks
            th = min(row_tile, oh - rs)
            m = th * ow

            # ---- assemble the (m, kh*kw*cg) patch slab in VMEM -------------
            # Each tap slice is a contiguous static window of the phase grid;
            # the reshape only collapses the two leading (non-lane) dims.
            for t in range(kh * kw):
                i, j = divmod(t, kw)
                ri, cj = i * dh, j * dw
                p, r0 = ri % sh, ri // sh
                q, c0 = cj % sw, cj // sw
                tap = ph_ref[0, p * sw + q,
                             r0 + rs:r0 + rs + th,
                             c0:c0 + ow,
                             ch0:ch0 + cg]                      # (th, ow, cg)
                slab_ref[0:m, t * cg:(t + 1) * cg] = tap.reshape(m, cg)

            # ---- one MXU contraction over K = kh*kw*cg ----------------------
            # (ocg, K) x (m, K)^T -> (ocg, m): spatial dim lands on lanes.
            slab = slab_ref[0:m, :]
            acc = lax.dot_general(
                w_ref[g], slab,
                dimension_numbers=(((1,), (1,)), ((), ())),
                preferred_element_type=jnp.float32)
            acc = acc + b_ref[oc0:oc0 + ocg, :]                 # f32 bias add

            # ---- lane-dense, per-group direct store -------------------------
            o_ref[0, oc0:oc0 + ocg, rs * ow:rs * ow + m] = acc.astype(o_ref.dtype)


# ----------------------------- helpers ---------------------------------------
def _pick_vmem_limit(bytes_needed):
    """Generation-aware VMEM limit (75% of capacity, >= 16 MiB, >= need)."""
    cap = None
    try:
        cap = getattr(pltpu.get_tpu_info(), "vmem_capacity_bytes", None)
    except Exception:
        cap = None
    if not cap:
        cap = 64 * 1024 * 1024          # conservative: v7x per-TensorCore VMEM
    limit = max(int(bytes_needed), 16 * 1024 * 1024)
    return int(min(limit, int(0.75 * cap)))


# ----------------------------- wrapper ---------------------------------------
def dsconv2d_forward(x, weight, bias, stride, padding, dilation, groups,
                     compute_dtype=None, out_dtype=None):
    """
    x:      [N, Cin, H, W]                (NCHW, like F.conv2d input)
    weight: [Cout, Cin//groups, KH, KW]   (OIHW)
    bias:   [Cout] or None
    Returns [N, Cout, OH, OW].
    """
    n, cin, h, w = x.shape
    cout, cg, kh, kw = weight.shape
    sh, sw = stride
    ph_, pw_ = padding
    dh, dw = dilation
    if cin % groups != 0 or cout % groups != 0:
        raise ValueError("in/out channels must be divisible by groups")
    if cg != cin // groups:
        raise ValueError("weight shape inconsistent with groups")

    oh = (h + 2 * ph_ - dh * (kh - 1) - 1) // sh + 1
    ow = (w + 2 * pw_ - dw * (kw - 1) - 1) // sw + 1
    ocg = cout // groups
    ktot = kh * kw * cg

    if compute_dtype is None:
        compute_dtype = x.dtype
    if out_dtype is None:
        out_dtype = x.dtype
    if bias is None:
        bias = jnp.zeros((cout,), jnp.float32)

    # ---- glue (single input-sized pass) -------------------------------------
    # Pad in NCHW (conv zero-pad + right/bottom pad up to the stride grid),
    # then fuse stride-phase decomposition and channel-last relayout into one
    # reshape/transpose.  phases[n, p*sw+q, r, c, ch] = x_pad[n, ch, r*sh+p, c*sw+q].
    hp, wp = h + 2 * ph_, w + 2 * pw_
    hph, wph = -(-hp // sh), -(-wp // sw)
    x_pad = jnp.pad(
        x, ((0, 0), (0, 0), (ph_, hph * sh - h - ph_), (pw_, wph * sw - w - pw_)))
    if sh == 1 and sw == 1:
        phases = x_pad.transpose(0, 2, 3, 1).reshape(n, 1, hph, wph, cin)
    else:
        phases = (x_pad.reshape(n, cin, hph, sh, wph, sw)
                       .transpose(0, 3, 5, 2, 4, 1)       # n, p, q, r, c, ch
                       .reshape(n, sh * sw, hph, wph, cin))
    phases = phases.astype(compute_dtype)

    # Static in-bounds proof for the in-kernel tap windows (VMEM has no runtime
    # bounds check, so keep this assert next to the padding math).
    r0_max = ((kh - 1) * dh) // sh
    c0_max = ((kw - 1) * dw) // sw
    assert r0_max + oh <= hph and c0_max + ow <= wph, "tap window out of bounds"

    # OIHW -> (groups, OCg, KH*KW*Cg) with K ordered (i, j, c) to match the slab.
    w3 = (weight.reshape(groups, ocg, cg, kh, kw)
                .transpose(0, 1, 3, 4, 2)
                .reshape(groups, ocg, ktot)
                .astype(compute_dtype))
    b2 = bias.reshape(cout, 1).astype(jnp.float32)

    # Spatial M tile: ~512 output pixels per inner step (whole rows).
    row_tile = min(oh, max(1, 512 // max(1, ow)))

    kern = functools.partial(
        _dsconv2d_kernel, kh=kh, kw=kw, sh=sh, sw=sw, dh=dh, dw=dw,
        oh=oh, ow=ow, groups=groups, cg=cg, ocg=ocg, row_tile=row_tile)

    bpc = jnp.dtype(compute_dtype).itemsize
    bpo = jnp.dtype(out_dtype).itemsize
    need = (2 * (sh * sw * hph * wph * cin) * bpc          # phases block (x2 buf)
            + 2 * cout * oh * ow * bpo                     # output block (x2 buf)
            + groups * ocg * ktot * bpc + cout * 4         # weights + bias
            + row_tile * ow * max(ktot, 128) * bpc         # slab scratch (padded)
            + (4 << 20))                                   # headroom

    out = pl.pallas_call(
        kern,
        out_shape=jax.ShapeDtypeStruct((n, cout, oh * ow), out_dtype),
        grid_spec=pltpu.PrefetchScalarGridSpec(
            num_scalar_prefetch=0,
            grid=(n,),
            in_specs=[
                pl.BlockSpec((1, sh * sw, hph, wph, cin),
                             lambda b: (b, 0, 0, 0, 0)),
                pl.BlockSpec((groups, ocg, ktot), lambda b: (0, 0, 0)),
                pl.BlockSpec((cout, 1), lambda b: (0, 0)),
            ],
            out_specs=pl.BlockSpec((1, cout, oh * ow), lambda b: (b, 0, 0)),
            scratch_shapes=[pltpu.VMEM((row_tile * ow, ktot), compute_dtype)],
        ),
        compiler_params=pltpu.CompilerParams(
            dimension_semantics=("parallel",),       # megacore shard over batch
            vmem_limit_bytes=_pick_vmem_limit(need),
        ),
    )(phases, w3, b2)

    # Output is already channel-major (NCHW-flat): just split the spatial dim.
    return out.reshape(n, cout, oh, ow)


# ----------------------------- module setup ---------------------------------
def init_dsconv2d_params(key, in_channels, out_channels, kernel_size, groups=1,
                         dtype=jnp.float32):
    """Deterministic stand-in for DSConv2d.init_params (kaiming-style bounds)."""
    kh, kw = kernel_size
    kw_shape = (out_channels, in_channels // groups, kh, kw)
    fan_in = (in_channels // groups) * kh * kw
    wkey, bkey = jax.random.split(key)
    bound_w = math.sqrt(1.0 / fan_in)
    weight = jax.random.uniform(wkey, kw_shape, dtype, -bound_w, bound_w)
    bound_b = 1.0 / math.sqrt(fan_in)
    bias = jax.random.uniform(bkey, (out_channels,), dtype, -bound_b, bound_b)
    return weight, bias


if __name__ == "__main__":
    key = jax.random.PRNGKey(0)
    xkey, pkey, p2key = jax.random.split(key, 3)

    N, Cin, H, W = 2, 4, 16, 16
    Cout, K = 8, 3
    x = jax.random.normal(xkey, (N, Cin, H, W), dtype=jnp.float32)

    def ref_conv(x, w, b, stride, padding, dilation, groups):
        return lax.conv_general_dilated(
            x, w, window_strides=stride,
            padding=[(padding[0], padding[0]), (padding[1], padding[1])],
            rhs_dilation=dilation,
            dimension_numbers=("NCHW", "OIHW", "NCHW"),
            feature_group_count=groups) + b[None, :, None, None]

    # ---- Case 1: DSConv2d(4, 8, 3, stride=2, padding=1), f32 ---------------
    stride, padding, dilation, groups = (2, 2), (1, 1), (1, 1), 1
    weight, bias = init_dsconv2d_params(pkey, Cin, Cout, (K, K), groups)
    ref = ref_conv(x, weight, bias, stride, padding, dilation, groups)

    fwd = jax.jit(functools.partial(
        dsconv2d_forward, stride=stride, padding=padding,
        dilation=dilation, groups=groups))
    out = fwd(x, weight, bias)
    jax.block_until_ready(out)
    assert out.shape == ref.shape, (out.shape, ref.shape)
    assert jnp.allclose(out, ref, atol=1e-4, rtol=1e-4), "f32 mismatch (case 1)"

    # ---- Case 1b: bf16 compute, f32 accumulation, f32 output ----------------
    fwd_bf16 = jax.jit(functools.partial(
        dsconv2d_forward, stride=stride, padding=padding,
        dilation=dilation, groups=groups, compute_dtype=jnp.bfloat16))
    out_bf16 = fwd_bf16(x, weight, bias)
    jax.block_until_ready(out_bf16)
    assert out_bf16.shape == ref.shape
    assert out_bf16.dtype == ref.dtype
    assert jnp.allclose(out_bf16, ref, atol=1e-1, rtol=1e-1), "bf16 mismatch"

    # ---- Case 2: stride 1 (pure-reshape phase path), dilation 2, groups 2 ---
    stride2, padding2, dilation2, groups2 = (1, 1), (2, 2), (2, 2), 2
    weight2, bias2 = init_dsconv2d_params(p2key, Cin, Cout, (K, K), groups2)
    ref2 = ref_conv(x, weight2, bias2, stride2, padding2, dilation2, groups2)
    fwd2 = jax.jit(functools.partial(
        dsconv2d_forward, stride=stride2, padding=padding2,
        dilation=dilation2, groups=groups2))
    out2 = fwd2(x, weight2, bias2)
    jax.block_until_ready(out2)
    assert out2.shape == ref2.shape, (out2.shape, ref2.shape)
    assert jnp.allclose(out2, ref2, atol=1e-4, rtol=1e-4), "f32 mismatch (case 2)"

    print("KERNEL_OK")
</pallas_src>

<mosaic_0001>
module attributes {stable_mosaic.version = 11 : i64} {
  func.func @_dsconv2d_kernel(%arg0: i32, %arg1: memref<1x4x9x9x4xf32, #tpu.memory_space<vmem>>, %arg2: memref<1x8x36xf32, #tpu.memory_space<vmem>>, %arg3: memref<8x1xf32, #tpu.memory_space<vmem>>, %arg4: memref<1x8x64xf32, #tpu.memory_space<vmem>>, %arg5: memref<64x36xf32, #tpu.memory_space<vmem>>) attributes {dimension_semantics = [#tpu.dimension_semantics<parallel>], iteration_bounds = array<i64: 2>, scalar_prefetch = 0 : i64, scratch_operands = 1 : i64, tpu.core_type = #tpu.core_type<tc>, window_params = [{transform_indices = @transform_0, window_bounds = array<i64: 1, 4, 9, 9, 4>}, {pipeline_mode = #tpu.pipeline_mode<synchronous>, transform_indices = @transform_1, window_bounds = array<i64: 1, 8, 36>}, {pipeline_mode = #tpu.pipeline_mode<synchronous>, transform_indices = @transform_2, window_bounds = array<i64: 8, 1>}, {transform_indices = @transform_3, window_bounds = array<i64: 1, 8, 64>}]} {
    %c0 = arith.constant 0 : index
    %c0_0 = arith.constant 0 : index
    %c0_1 = arith.constant 0 : index
    %c0_2 = arith.constant 0 : index
    %c0_3 = arith.constant 0 : index
    %0 = vector.load %arg1[%c0, %c0_0, %c0_1, %c0_2, %c0_3] : memref<1x4x9x9x4xf32, #tpu.memory_space<vmem>>, vector<1x1x8x8x4xf32>
    %1 = vector.shape_cast %0 : vector<1x1x8x8x4xf32> to vector<8x8x4xf32>
    %2 = vector.shape_cast %1 : vector<8x8x4xf32> to vector<64x4xf32>
    %c0_4 = arith.constant 0 : index
    %c0_5 = arith.constant 0 : index
    %3 = vector.load %arg5[%c0_4, %c0_5] : memref<64x36xf32, #tpu.memory_space<vmem>>, vector<64x4xf32>
    tpu.vector_store %arg5[%c0_4, %c0_5], %2 {strides = array<i32>} : memref<64x36xf32, #tpu.memory_space<vmem>>, vector<64x4xf32>,
    %c0_6 = arith.constant 0 : index
    %c1 = arith.constant 1 : index
    %c0_7 = arith.constant 0 : index
    %c0_8 = arith.constant 0 : index
    %c0_9 = arith.constant 0 : index
    %4 = vector.load %arg1[%c0_6, %c1, %c0_7, %c0_8, %c0_9] : memref<1x4x9x9x4xf32, #tpu.memory_space<vmem>>, vector<1x1x8x8x4xf32>
    %5 = vector.shape_cast %4 : vector<1x1x8x8x4xf32> to vector<8x8x4xf32>
    %6 = vector.shape_cast %5 : vector<8x8x4xf32> to vector<64x4xf32>
    %c0_10 = arith.constant 0 : index
    %c4 = arith.constant 4 : index
    %7 = vector.load %arg5[%c0_10, %c4] : memref<64x36xf32, #tpu.memory_space<vmem>>, vector<64x4xf32>
    tpu.vector_store %arg5[%c0_10, %c4], %6 {strides = array<i32>} : memref<64x36xf32, #tpu.memory_space<vmem>>, vector<64x4xf32>,
    %c0_11 = arith.constant 0 : index
    %c0_12 = arith.constant 0 : index
    %c0_13 = arith.constant 0 : index
    %c1_14 = arith.constant 1 : index
    %c0_15 = arith.constant 0 : index
    %8 = vector.load %arg1[%c0_11, %c0_12, %c0_13, %c1_14, %c0_15] : memref<1x4x9x9x4xf32, #tpu.memory_space<vmem>>, vector<1x1x8x8x4xf32>
    %9 = vector.shape_cast %8 : vector<1x1x8x8x4xf32> to vector<8x8x4xf32>
    %10 = vector.shape_cast %9 : vector<8x8x4xf32> to vector<64x4xf32>
    %c0_16 = arith.constant 0 : index
    %c8 = arith.constant 8 : index
    %11 = vector.load %arg5[%c0_16, %c8] : memref<64x36xf32, #tpu.memory_space<vmem>>, vector<64x4xf32>
    tpu.vector_store %arg5[%c0_16, %c8], %10 {strides = array<i32>} : memref<64x36xf32, #tpu.memory_space<vmem>>, vector<64x4xf32>,
    %c0_17 = arith.constant 0 : index
    %c2 = arith.constant 2 : index
    %c0_18 = arith.constant 0 : index
    %c0_19 = arith.constant 0 : index
    %c0_20 = arith.constant 0 : index
    %12 = vector.load %arg1[%c0_17, %c2, %c0_18, %c0_19, %c0_20] : memref<1x4x9x9x4xf32, #tpu.memory_space<vmem>>, vector<1x1x8x8x4xf32>
    %13 = vector.shape_cast %12 : vector<1x1x8x8x4xf32> to vector<8x8x4xf32>
    %14 = vector.shape_cast %13 : vector<8x8x4xf32> to vector<64x4xf32>
    %c0_21 = arith.constant 0 : index
    %c12 = arith.constant 12 : index
    %15 = vector.load %arg5[%c0_21, %c12] : memref<64x36xf32, #tpu.memory_space<vmem>>, vector<64x4xf32>
    tpu.vector_store %arg5[%c0_21, %c12], %14 {strides = array<i32>} : memref<64x36xf32, #tpu.memory_space<vmem>>, vector<64x4xf32>,
    %c0_22 = arith.constant 0 : index
    %c3 = arith.constant 3 : index
    %c0_23 = arith.constant 0 : index
    %c0_24 = arith.constant 0 : index
    %c0_25 = arith.constant 0 : index
    %16 = vector.load %arg1[%c0_22, %c3, %c0_23, %c0_24, %c0_25] : memref<1x4x9x9x4xf32, #tpu.memory_space<vmem>>, vector<1x1x8x8x4xf32>
    %17 = vector.shape_cast %16 : vector<1x1x8x8x4xf32> to vector<8x8x4xf32>
    %18 = vector.shape_cast %17 : vector<8x8x4xf32> to vector<64x4xf32>
    %c0_26 = arith.constant 0 : index
    %c16 = arith.constant 16 : index
    %19 = vector.load %arg5[%c0_26, %c16] : memref<64x36xf32, #tpu.memory_space<vmem>>, vector<64x4xf32>
    tpu.vector_store %arg5[%c0_26, %c16], %18 {strides = array<i32>} : memref<64x36xf32, #tpu.memory_space<vmem>>, vector<64x4xf32>,
    %c0_27 = arith.constant 0 : index
    %c2_28 = arith.constant 2 : index
    %c0_29 = arith.constant 0 : index
    %c1_30 = arith.constant 1 : index
    %c0_31 = arith.constant 0 : index
    %20 = vector.load %arg1[%c0_27, %c2_28, %c0_29, %c1_30, %c0_31] : memref<1x4x9x9x4xf32, #tpu.memory_space<vmem>>, vector<1x1x8x8x4xf32>
    %21 = vector.shape_cast %20 : vector<1x1x8x8x4xf32> to vector<8x8x4xf32>
    %22 = vector.shape_cast %21 : vector<8x8x4xf32> to vector<64x4xf32>
    %c0_32 = arith.constant 0 : index
    %c20 = arith.constant 20 : index
    %23 = vector.load %arg5[%c0_32, %c20] : memref<64x36xf32, #tpu.memory_space<vmem>>, vector<64x4xf32>
    tpu.vector_store %arg5[%c0_32, %c20], %22 {strides = array<i32>} : memref<64x36xf32, #tpu.memory_space<vmem>>, vector<64x4xf32>,
    %c0_33 = arith.constant 0 : index
    %c0_34 = arith.constant 0 : index
    %c1_35 = arith.constant 1 : index
    %c0_36 = arith.constant 0 : index
    %c0_37 = arith.constant 0 : index
    %24 = vector.load %arg1[%c0_33, %c0_34, %c1_35, %c0_36, %c0_37] : memref<1x4x9x9x4xf32, #tpu.memory_space<vmem>>, vector<1x1x8x8x4xf32>
    %25 = vector.shape_cast %24 : vector<1x1x8x8x4xf32> to vector<8x8x4xf32>
    %26 = vector.shape_cast %25 : vector<8x8x4xf32> to vector<64x4xf32>
    %c0_38 = arith.constant 0 : index
    %c24 = arith.constant 24 : index
    %27 = vector.load %arg5[%c0_38, %c24] : memref<64x36xf32, #tpu.memory_space<vmem>>, vector<64x4xf32>
    tpu.vector_store %arg5[%c0_38, %c24], %26 {strides = array<i32>} : memref<64x36xf32, #tpu.memory_space<vmem>>, vector<64x4xf32>,
    %c0_39 = arith.constant 0 : index
    %c1_40 = arith.constant 1 : index
    %c1_41 = arith.constant 1 : index
    %c0_42 = arith.constant 0 : index
    %c0_43 = arith.constant 0 : index
    %28 = vector.load %arg1[%c0_39, %c1_40, %c1_41, %c0_42, %c0_43] : memref<1x4x9x9x4xf32, #tpu.memory_space<vmem>>, vector<1x1x8x8x4xf32>
    %29 = vector.shape_cast %28 : vector<1x1x8x8x4xf32> to vector<8x8x4xf32>
    %30 = vector.shape_cast %29 : vector<8x8x4xf32> to vector<64x4xf32>
    %c0_44 = arith.constant 0 : index
    %c28 = arith.constant 28 : index
    %31 = vector.load %arg5[%c0_44, %c28] : memref<64x36xf32, #tpu.memory_space<vmem>>, vector<64x4xf32>
    tpu.vector_store %arg5[%c0_44, %c28], %30 {strides = array<i32>} : memref<64x36xf32, #tpu.memory_space<vmem>>, vector<64x4xf32>,
    %c0_45 = arith.constant 0 : index
    %c0_46 = arith.constant 0 : index
    %c1_47 = arith.constant 1 : index
    %c1_48 = arith.constant 1 : index
    %c0_49 = arith.constant 0 : index
    %32 = vector.load %arg1[%c0_45, %c0_46, %c1_47, %c1_48, %c0_49] : memref<1x4x9x9x4xf32, #tpu.memory_space<vmem>>, vector<1x1x8x8x4xf32>
    %33 = vector.shape_cast %32 : vector<1x1x8x8x4xf32> to vector<8x8x4xf32>
    %34 = vector.shape_cast %33 : vector<8x8x4xf32> to vector<64x4xf32>
    %c0_50 = arith.constant 0 : index
    %c32 = arith.constant 32 : index
    %35 = vector.load %arg5[%c0_50, %c32] : memref<64x36xf32, #tpu.memory_space<vmem>>, vector<64x4xf32>
    tpu.vector_store %arg5[%c0_50, %c32], %34 {strides = array<i32>} : memref<64x36xf32, #tpu.memory_space<vmem>>, vector<64x4xf32>,
    %c0_51 = arith.constant 0 : index
    %c0_52 = arith.constant 0 : index
    %36 = vector.load %arg5[%c0_51, %c0_52] : memref<64x36xf32, #tpu.memory_space<vmem>>, vector<64x36xf32>
    %c0_53 = arith.constant 0 : index
    %c0_54 = arith.constant 0 : index
    %c0_55 = arith.constant 0 : index
    %37 = vector.load %arg2[%c0_53, %c0_54, %c0_55] : memref<1x8x36xf32, #tpu.memory_space<vmem>>, vector<1x8x36xf32>
    %38 = vector.shape_cast %37 : vector<1x8x36xf32> to vector<8x36xf32>
    %cst = arith.constant dense<0.000000e+00> : vector<8x64xf32>
    %39 = tpu.matmul %38, %36, %cst {dimension_numbers = #tpu.dot_dimension_numbers<[1], [1], [0], [0], [0, 0, 1, 0], [], []>} : vector<8x36xf32>, vector<64x36xf32>, vector<8x64xf32> -> vector<8x64xf32>
    %c0_56 = arith.constant 0 : index
    %c0_57 = arith.constant 0 : index
    %40 = vector.load %arg3[%c0_56, %c0_57] : memref<8x1xf32, #tpu.memory_space<vmem>>, vector<8x1xf32>
    %41 = vector.broadcast %40 : vector<8x1xf32> to vector<8x64xf32>
    %42 = arith.addf %39, %41 : vector<8x64xf32>
    %c0_58 = arith.constant 0 : index
    %c0_59 = arith.constant 0 : index
    %c0_60 = arith.constant 0 : index
    %43 = vector.load %arg4[%c0_58, %c0_59, %c0_60] : memref<1x8x64xf32, #tpu.memory_space<vmem>>, vector<1x8x64xf32>
    %44 = vector.shape_cast %43 : vector<1x8x64xf32> to vector<8x64xf32>
    %45 = vector.shape_cast %42 : vector<8x64xf32> to vector<1x8x64xf32>
    tpu.vector_store %arg4[%c0_58, %c0_59, %c0_60], %45 {strides = array<i32>} : memref<1x8x64xf32, #tpu.memory_space<vmem>>, vector<1x8x64xf32>,
    return
  }
  func.func @transform_0(%arg0: i32) -> (i32, i32, i32, i32, i32) {
    %c0_i32 = arith.constant 0 : i32
    %c0_i32_0 = arith.constant 0 : i32
    %c0_i32_1 = arith.constant 0 : i32
    %c0_i32_2 = arith.constant 0 : i32
    %c0_i32_3 = arith.constant 0 : i32
    return %arg0, %c0_i32, %c0_i32_0, %c0_i32_1, %c0_i32_2 : i32, i32, i32, i32, i32
  }
  func.func @transform_1(%arg0: i32) -> (i32, i32, i32) {
    %c0_i32 = arith.constant 0 : i32
    %c0_i32_0 = arith.constant 0 : i32
    %c0_i32_1 = arith.constant 0 : i32
    %c0_i32_2 = arith.constant 0 : i32
    return %c0_i32, %c0_i32_0, %c0_i32_1 : i32, i32, i32
  }
  func.func @transform_2(%arg0: i32) -> (i32, i32) {
    %c0_i32 = arith.constant 0 : i32
    %c0_i32_0 = arith.constant 0 : i32
    %c0_i32_1 = arith.constant 0 : i32
    return %c0_i32, %c0_i32_0 : i32, i32
  }
  func.func @transform_3(%arg0: i32) -> (i32, i32, i32) {
    %c0_i32 = arith.constant 0 : i32
    %c0_i32_0 = arith.constant 0 : i32
    %c0_i32_1 = arith.constant 0 : i32
    return %arg0, %c0_i32, %c0_i32_0 : i32, i32, i32
  }
}

</mosaic_0001>

<llo_original>
// kernel: dsconv2d_forward.1
$region0: #{dsconv2d_forward.1}
  #allocation0 [shape = 'u32[]', space=smem, size = 0x4, offset = 0x4, fixed_abs, tag = 'smem constant byte address 0x4 - core index']
  #allocation1 [shape = 'u32[144,128]{1,0:T(1,128)}', space=vmem, size = 0x12000, scoped, tag = 'internal scratch']
  #allocation2 [shape = 'f32[64,36]{1,0:T(8,128)}', space=vmem, size = 0x8000, scoped, tag = 'scratch operand']
  %s0 = inlined_call_operand.vmem [shape: f32[2,4,9,9,4], index: 0, kind: input, shape index: {}]
  %s1 = inlined_call_operand.vmem [shape: f32[1,8,36], index: 1, kind: input, shape index: {}]
  %s2 = inlined_call_operand.vmem [shape: f32[8,1], index: 2, kind: input, shape index: {}]
  %s3 = inlined_call_operand.vmem [shape: f32[2,8,64], index: 3, kind: output, shape index: {}]
  %s4 = sld [smem:[#allocation0]]
  $region45: #{dsconv2d_forward.1} parent=0
    _
  %s6 = ssub.s32 1, %s4
  %s7 = scalar_select 0, %s6, %s4
  loop: start=0, step=1, limit=4
  $region2: #{dsconv2d_forward.1} parent=0 // loop_pre_header
    _
  $region3: #{dsconv2d_forward.1} parent=0 // loop_header
    %s9 = sphi 0, %s13
    %p10 = scmp.ge.s32.totalorder %s9, 4
    %s19 = sphi 0, %s21
    %s22 = sphi 0, %s19
    %s23 = sphi 0, %s22
    %s39 = sphi 0, %s23
    %s43 = sphi 0, %s43
    %s45 = sphi 0, %s43
    %s46 = sphi 0, %s45
    %s60 = sphi 0, %s46
    %s64 = sphi 0, %s64
    %s66 = sphi 0, %s64
    %s67 = sphi 0, %s66
    %s81 = sphi 0, %s67
    %s87 = sphi 0, %s89
    %s90 = sphi 0, %s87
    %s91 = sphi 0, %s90
    %s107 = sphi 0, %s91
  $region4: #{dsconv2d_forward.1} parent=0 // loop_header_branch
    %12 = sbr.rel (%p10) target = $region8
  $region5: #{dsconv2d_forward.1} parent=0 // loop_body
    %s14 = ssub.s32 %s9, 1
    %s15 = ssub.s32 %s9, 2
    %s16 = sadd.s32 %s9, 1
    %s17 = ssub.s32 %s9, %s16
    %p18 = scmp.eq.s32.totalorder %s17, 0
    %s20 = sadd.s32 %s19, 1
    %s21 = scalar_select %p18, %s19, %s20
    %p24 = pneg %p18
    %p25 = scmp.eq.s32.totalorder %s9, 1
    %p26 = por %p24, %p25
    %p27 = scmp.ne.s32.totalorder %s19, %s22
    %p28 = scmp.eq.s32.totalorder %s9, 0
    %p29 = por %p27, %p28
    %p30 = scmp.ne.s32.totalorder %s19, %s22
    %p31 = scmp.eq.s32.totalorder %s14, 1
    %p32 = por %p30, %p31
    %p33 = scmp.ne.s32.totalorder %s22, %s23
    %p34 = scmp.eq.s32.totalorder %s14, 0
    %p35 = por %p33, %p34
    %p36 = scmp.ne.s32.totalorder %s22, %s23
    %p37 = scmp.eq.s32.totalorder %s15, 1
    %p38 = por %p36, %p37
    %p40 = scmp.ne.s32.totalorder %s23, %s39
    %p41 = scmp.eq.s32.totalorder %s15, 0
    %p42 = por %p40, %p41
    %s44 = sadd.s32 %s43, 1
    %p47 = scmp.eq.s32.totalorder %s9, 1
    %p48 = scmp.ne.s32.totalorder %s43, %s45
    %p49 = scmp.eq.s32.totalorder %s9, 0
    %p50 = por %p48, %p49
    %p51 = scmp.ne.s32.totalorder %s43, %s45
    %p52 = scmp.eq.s32.totalorder %s14, 1
    %p53 = por %p51, %p52
    %p54 = scmp.ne.s32.totalorder %s45, %s46
    %p55 = scmp.eq.s32.totalorder %s14, 0
    %p56 = por %p54, %p55
    %p57 = scmp.ne.s32.totalorder %s45, %s46
    %p58 = scmp.eq.s32.totalorder %s15, 1
    %p59 = por %p57, %p58
    %p61 = scmp.ne.s32.totalorder %s46, %s60
    %p62 = scmp.eq.s32.totalorder %s15, 0
    %p63 = por %p61, %p62
    %s65 = sadd.s32 %s64, 1
    %p68 = scmp.eq.s32.totalorder %s9, 1
    %p69 = scmp.ne.s32.totalorder %s64, %s66
    %p70 = scmp.eq.s32.totalorder %s9, 0
    %p71 = por %p69, %p70
    %p72 = scmp.ne.s32.totalorder %s64, %s66
    %p73 = scmp.eq.s32.totalorder %s14, 1
    %p74 = por %p72, %p73
    %p75 = scmp.ne.s32.totalorder %s66, %s67
    %p76 = scmp.eq.s32.totalorder %s14, 0
    %p77 = por %p75, %p76
    %p78 = scmp.ne.s32.totalorder %s66, %s67
    %p79 = scmp.eq.s32.totalorder %s15, 1
    %p80 = por %p78, %p79
    %p82 = scmp.ne.s32.totalorder %s67, %s81
    %p83 = scmp.eq.s32.totalorder %s15, 0
    %p84 = por %p82, %p83
    %s85 = ssub.s32 %s9, %s16
    %p86 = scmp.eq.s32.totalorder %s85, 0
    %s88 = sadd.s32 %s87, 1
    %s89 = scalar_select %p86, %s87, %s88
    %p92 = pneg %p86
    %p93 = scmp.eq.s32.totalorder %s9, 1
    %p94 = por %p92, %p93
    %p95 = scmp.ne.s32.totalorder %s87, %s90
    %p96 = scmp.eq.s32.totalorder %s9, 0
    %p97 = por %p95, %p96
    %p98 = scmp.ne.s32.totalorder %s87, %s90
    %p99 = scmp.eq.s32.totalorder %s14, 1
    %p100 = por %p98, %p99
    %p101 = scmp.ne.s32.totalorder %s90, %s91
    %p102 = scmp.eq.s32.totalorder %s14, 0
    %p103 = por %p101, %p102
    %p104 = scmp.ne.s32.totalorder %s90, %s91
    %p105 = scmp.eq.s32.totalorder %s15, 1
    %p106 = por %p104, %p105
    %p108 = scmp.ne.s32.totalorder %s91, %s107
    %p109 = scmp.eq.s32.totalorder %s15, 0
    %p110 = por %p108, %p109
    %p111 = scmp.le.s32.totalorder 1, %s9
    %p112 = scmp.lt.s32.totalorder %s9, 3
    %p113 = pnand %p111, %p112
    %p114 = pneg %p113
    // Predicated region
    $region9: #{dsconv2d_forward.1} parent=5 // pred_check
      _
    $region10: #{dsconv2d_forward.1} parent=5 // pred_check_branch
      %116 = sbr.rel (%p113) target = $region12
    $region11: #{dsconv2d_forward.1} parent=5 // pred_region
      %s117 = ssub.s32 %s9, 1
      // Predicated region
      $region13: #{dsconv2d_forward.1} parent=11 // pred_check
        %p118 = pneg %p56
      $region14: #{dsconv2d_forward.1} parent=11 // pred_check_branch
        %120 = sbr.rel (%p118) target = $region16
      $region15: #{dsconv2d_forward.1} parent=11 // pred_region
        _
      $region16: #{dsconv2d_forward.1} parent=11 // pred_fallthru
        _
      // Predicated region
      $region17: #{dsconv2d_forward.1} parent=11 // pred_check
        %p121 = pneg %p77
      $region18: #{dsconv2d_forward.1} parent=11 // pred_check_branch
        %123 = sbr.rel (%p121) target = $region20
      $region19: #{dsconv2d_forward.1} parent=11 // pred_region
        _
      $region20: #{dsconv2d_forward.1} parent=11 // pred_fallthru
        _
    $region12: #{dsconv2d_forward.1} parent=5 // pred_fallthru
      _
    %p124 = scmp.lt.s32.totalorder %s9, 2
    // Predicated region
    $region21: #{dsconv2d_forward.1} parent=5 // pred_check
      %p125 = pneg %p124
    $region22: #{dsconv2d_forward.1} parent=5 // pred_check_branch
      %127 = sbr.rel (%p125) target = $region24
    $region23: #{dsconv2d_forward.1} parent=5 // pred_region
      // Predicated region
      $region25: #{dsconv2d_forward.1} parent=23 // pred_check
        %p128 = pneg %p29
      $region26: #{dsconv2d_forward.1} parent=23 // pred_check_branch
        %130 = sbr.rel (%p128) target = $region28
      $region27: #{dsconv2d_forward.1} parent=23 // pred_region
        %p131 = scmp.lt.s32.totalorder %s9, 1
        %s132 = scalar_select %p131, %s9, 1
        %s133 = smul.addr %s132, 72
        %s134 = smul.addr %s133, 8
        %s135 = scalar_lea.vmem %s0, %s134
      $region28: #{dsconv2d_forward.1} parent=23 // pred_fallthru
        _
    $region24: #{dsconv2d_forward.1} parent=5 // pred_fallthru
      _
    %p136 = scmp.le.s32.totalorder 1, %s9
    %p137 = scmp.lt.s32.totalorder %s9, 3
    %p138 = pnand %p136, %p137
    %p139 = pneg %p138
    // Predicated region
    $region29: #{dsconv2d_forward.1} parent=5 // pred_check
      _
    $region30: #{dsconv2d_forward.1} parent=5 // pred_check_branch
      %141 = sbr.rel (%p138) target = $region32
    $region31: #{dsconv2d_forward.1} parent=5 // pred_region
      %s142 = ssub.s32 %s9, 1
      %p143 = scmp.lt.s32.totalorder %s14, 1
      %s144 = scalar_select %p143, %s14, 1
      %s145 = smul.addr %s144, 72
      %s146 = smul.addr %s145, 8
      %s147 = scalar_lea.vmem %s0, %s146
      %p148 = pneg %p35
      %p149 = pneg %p32
      %p150 = pneg %p56
      %p151 = pneg %p53
      %p152 = pneg %p77
      %p153 = pneg %p74
      %p154 = pneg %p103
      %p155 = pneg %p100
      %p156 = scmp.lt.s32.totalorder %s14, 1
      %s157 = scalar_select %p156, %s14, 1
      %s158 = smul.addr %s157, 8
      %s159 = scalar_lea.vmem %s3, %s158
      %p160 = scmp.lt.s32.totalorder %s14, 1
      %s161 = scalar_select %p160, %s14, 1
      %s162 = smul.addr %s161, 72
      %s163 = smul.addr %s162, 8
      %s164 = scalar_lea.vmem %s0, %s163
      %p165 = scmp.lt.s32.totalorder %s14, 1
      %s166 = scalar_select %p165, %s14, 1
      %s167 = smul.addr %s166, 8
      %s168 = scalar_lea.vmem %s3, %s167
      %v169 = vld [vmem:[%s164] sm:$0xff]
      %v170 = vld [vmem:[%s164 + $0x10] sm:$0xff]
      %v171 = vld [vmem:[%s164 + $0x20] sm:$0xff]
      %v172 = vld [vmem:[%s164 + $0x30] sm:$0xff]
      %v173 = vld [vmem:[%s164 + $0x40] sm:$0xff]
      %v174 = vld [vmem:[%s164 + $0x50] sm:$0xff]
      %v175 = vld [vmem:[%s164 + $0x60] sm:$0xff]
      %v176 = vld [vmem:[%s164 + $0x70] sm:$0xff]
      %vm177 = vcmask 31744
      %178 = vst.msk [vmem:[#allocation2] sm:$0xff] %vm177, %v169
      %179 = vst.msk [vmem:[#allocation2 + $0x8] sm:$0xff] %vm177, %v170
      %180 = vst.msk [vmem:[#allocation2 + $0x10] sm:$0xff] %vm177, %v171
      %181 = vst.msk [vmem:[#allocation2 + $0x18] sm:$0xff] %vm177, %v172
      %182 = vst.msk [vmem:[#allocation2 + $0x20] sm:$0xff] %vm177, %v173
      %183 = vst.msk [vmem:[#allocation2 + $0x28] sm:$0xff] %vm177, %v174
      %184 = vst.msk [vmem:[#allocation2 + $0x30] sm:$0xff] %vm177, %v175
      %185 = vst.msk [vmem:[#allocation2 + $0x38] sm:$0xff] %vm177, %v176
      %s186 = scalar_lea.vmem %s164, 144
      %v187 = vld [vmem:[%s186] sm:$0xff]
      %v188 = vld [vmem:[%s186 + $0x10] sm:$0xff]
      %v189 = vld [vmem:[%s186 + $0x20] sm:$0xff]
      %v190 = vld [vmem:[%s186 + $0x30] sm:$0xff]
      %v191 = vld [vmem:[%s186 + $0x40] sm:$0xff]
      %v192 = vld [vmem:[%s186 + $0x50] sm:$0xff]
      %v193 = vld [vmem:[%s186 + $0x60] sm:$0xff]
      %v194 = vld [vmem:[%s186 + $0x70] sm:$0xff]
      %203 = vrot.lane.b32.xlu0 %v187, 4
      %v204 = vpop.permute.xlu0 %203
      %205 = vrot.lane.b32.xlu0 %v188, 4
      %v206 = vpop.permute.xlu0 %205
      %207 = vrot.lane.b32.xlu0 %v189, 4
      %v208 = vpop.permute.xlu0 %207
      %209 = vrot.lane.b32.xlu0 %v190, 4
      %v210 = vpop.permute.xlu0 %209
      %211 = vrot.lane.b32.xlu0 %v191, 4
      %v212 = vpop.permute.xlu0 %211
      %213 = vrot.lane.b32.xlu0 %v192, 4
      %v214 = vpop.permute.xlu0 %213
      %215 = vrot.lane.b32.xlu0 %v193, 4
      %v216 = vpop.permute.xlu0 %215
      %217 = vrot.lane.b32.xlu0 %v194, 4
      %v218 = vpop.permute.xlu0 %217
      %vm227 = vcmask 64544
      %228 = vst.msk [vmem:[#allocation2] sm:$0xff] %vm227, %v204
      %229 = vst.msk [vmem:[#allocation2 + $0x8] sm:$0xff] %vm227, %v206
      %230 = vst.msk [vmem:[#allocation2 + $0x10] sm:$0xff] %vm227, %v208
      %231 = vst.msk [vmem:[#allocation2 + $0x18] sm:$0xff] %vm227, %v210
      %232 = vst.msk [vmem:[#allocation2 + $0x20] sm:$0xff] %vm227, %v212
      %233 = vst.msk [vmem:[#allocation2 + $0x28] sm:$0xff] %vm227, %v214
      %234 = vst.msk [vmem:[#allocation2 + $0x30] sm:$0xff] %vm227, %v216
      %235 = vst.msk [vmem:[#allocation2 + $0x38] sm:$0xff] %vm227, %v218
      %v236 = vld [vmem:[%s164 + $0x1] sm:$0xff]
      %v237 = vld [vmem:[%s164 + $0x11] sm:$0xff]
      %v238 = vld [vmem:[%s164 + $0x21] sm:$0xff]
      %v239 = vld [vmem:[%s164 + $0x31] sm:$0xff]
      %v240 = vld [vmem:[%s164 + $0x41] sm:$0xff]
      %v241 = vld [vmem:[%s164 + $0x51] sm:$0xff]
      %v242 = vld [vmem:[%s164 + $0x61] sm:$0xff]
      %v243 = vld [vmem:[%s164 + $0x71] sm:$0xff]
      %252 = vrot.lane.b32.xlu0 %v236, 8
      %v253 = vpop.permute.xlu0 %252
      %254 = vrot.lane.b32.xlu0 %v237, 8
      %v255 = vpop.permute.xlu0 %254
      %256 = vrot.lane.b32.xlu0 %v238, 8
      %v257 = vpop.permute.xlu0 %256
      %258 = vrot.lane.b32.xlu0 %v239, 8
      %v259 = vpop.permute.xlu0 %258
      %260 = vrot.lane.b32.xlu0 %v240, 8
      %v261 = vpop.permute.xlu0 %260
      %262 = vrot.lane.b32.xlu0 %v241, 8
      %v263 = vpop.permute.xlu0 %262
      %264 = vrot.lane.b32.xlu0 %v242, 8
      %v265 = vpop.permute.xlu0 %264
      %266 = vrot.lane.b32.xlu0 %v243, 8
      %v267 = vpop.permute.xlu0 %266
      %vm276 = vcmask 97344
      %277 = vst.msk [vmem:[#allocation2] sm:$0xff] %vm276, %v253
      %278 = vst.msk [vmem:[#allocation2 + $0x8] sm:$0xff] %vm276, %v255
      %279 = vst.msk [vmem:[#allocation2 + $0x10] sm:$0xff] %vm276, %v257
      %280 = vst.msk [vmem:[#allocation2 + $0x18] sm:$0xff] %vm276, %v259
      %281 = vst.msk [vmem:[#allocation2 + $0x20] sm:$0xff] %vm276, %v261
      %282 = vst.msk [vmem:[#allocation2 + $0x28] sm:$0xff] %vm276, %v263
      %283 = vst.msk [vmem:[#allocation2 + $0x30] sm:$0xff] %vm276, %v265
      %284 = vst.msk [vmem:[#allocation2 + $0x38] sm:$0xff] %vm276, %v267
      %s285 = scalar_lea.vmem %s164, 288
      %v286 = vld [vmem:[%s285] sm:$0xff]
      %v287 = vld [vmem:[%s285 + $0x10] sm:$0xff]
      %v288 = vld [vmem:[%s285 + $0x20] sm:$0xff]
      %v289 = vld [vmem:[%s285 + $0x30] sm:$0xff]
      %v290 = vld [vmem:[%s285 + $0x40] sm:$0xff]
      %v291 = vld [vmem:[%s285 + $0x50] sm:$0xff]
      %v292 = vld [vmem:[%s285 + $0x60] sm:$0xff]
      %v293 = vld [vmem:[%s285 + $0x70] sm:$0xff]
      %302 = vrot.lane.b32.xlu0 %v286, 12
      %v303 = vpop.permute.xlu0 %302
      %304 = vrot.lane.b32.xlu0 %v287, 12
      %v305 = vpop.permute.xlu0 %304
      %306 = vrot.lane.b32.xlu0 %v288, 12
      %v307 = vpop.permute.xlu0 %306
      %308 = vrot.lane.b32.xlu0 %v289, 12
      %v309 = vpop.permute.xlu0 %308
      %310 = vrot.lane.b32.xlu0 %v290, 12
      %v311 = vpop.permute.xlu0 %310
      %312 = vrot.lane.b32.xlu0 %v291, 12
      %v313 = vpop.permute.xlu0 %312
      %314 = vrot.lane.b32.xlu0 %v292, 12
      %v315 = vpop.permute.xlu0 %314
      %316 = vrot.lane.b32.xlu0 %v293, 12
      %v317 = vpop.permute.xlu0 %316
      %vm326 = vcmask 130144
      %327 = vst.msk [vmem:[#allocation2] sm:$0xff] %vm326, %v303
      %328 = vst.msk [vmem:[#allocation2 + $0x8] sm:$0xff] %vm326, %v305
      %329 = vst.msk [vmem:[#allocation2 + $0x10] sm:$0xff] %vm326, %v307
      %330 = vst.msk [vmem:[#allocation2 + $0x18] sm:$0xff] %vm326, %v309
      %331 = vst.msk [vmem:[#allocation2 + $0x20] sm:$0xff] %vm326, %v311
      %332 = vst.msk [vmem:[#allocation2 + $0x28] sm:$0xff] %vm326, %v313
      %333 = vst.msk [vmem:[#allocation2 + $0x30] sm:$0xff] %vm326, %v315
      %334 = vst.msk [vmem:[#allocation2 + $0x38] sm:$0xff] %vm326, %v317
      %s335 = scalar_lea.vmem %s164, 432
      %v336 = vld [vmem:[%s335] sm:$0xff]
      %v337 = vld [vmem:[%s335 + $0x10] sm:$0xff]
      %v338 = vld [vmem:[%s335 + $0x20] sm:$0xff]
      %v339 = vld [vmem:[%s335 + $0x30] sm:$0xff]
      %v340 = vld [vmem:[%s335 + $0x40] sm:$0xff]
      %v341 = vld [vmem:[%s335 + $0x50] sm:$0xff]
      %v342 = vld [vmem:[%s335 + $0x60] sm:$0xff]
      %v343 = vld [vmem:[%s335 + $0x70] sm:$0xff]
      %352 = vrot.lane.b32.xlu0 %v336, 16
      %v353 = vpop.permute.xlu0 %352
      %354 = vrot.lane.b32.xlu0 %v337, 16
      %v355 = vpop.permute.xlu0 %354
      %356 = vrot.lane.b32.xlu0 %v338, 16
      %v357 = vpop.permute.xlu0 %356
      %358 = vrot.lane.b32.xlu0 %v339, 16
      %v359 = vpop.permute.xlu0 %358
      %360 = vrot.lane.b32.xlu0 %v340, 16
      %v361 = vpop.permute.xlu0 %360
      %362 = vrot.lane.b32.xlu0 %v341, 16
      %v363 = vpop.permute.xlu0 %362
      %364 = vrot.lane.b32.xlu0 %v342, 16
      %v365 = vpop.permute.xlu0 %364
      %366 = vrot.lane.b32.xlu0 %v343, 16
      %v367 = vpop.permute.xlu0 %366
      %vm376 = vcmask 162944
      %377 = vst.msk [vmem:[#allocation2] sm:$0xff] %vm376, %v353
      %378 = vst.msk [vmem:[#allocation2 + $0x8] sm:$0xff] %vm376, %v355
      %379 = vst.msk [vmem:[#allocation2 + $0x10] sm:$0xff] %vm376, %v357
      %380 = vst.msk [vmem:[#allocation2 + $0x18] sm:$0xff] %vm376, %v359
      %381 = vst.msk [vmem:[#allocation2 + $0x20] sm:$0xff] %vm376, %v361
      %382 = vst.msk [vmem:[#allocation2 + $0x28] sm:$0xff] %vm376, %v363
      %383 = vst.msk [vmem:[#allocation2 + $0x30] sm:$0xff] %vm376, %v365
      %384 = vst.msk [vmem:[#allocation2 + $0x38] sm:$0xff] %vm376, %v367
      %v385 = vld [vmem:[%s285 + $0x1] sm:$0xff]
      %v386 = vld [vmem:[%s285 + $0x11] sm:$0xff]
      %v387 = vld [vmem:[%s285 + $0x21] sm:$0xff]
      %v388 = vld [vmem:[%s285 + $0x31] sm:$0xff]
      %v389 = vld [vmem:[%s285 + $0x41] sm:$0xff]
      %v390 = vld [vmem:[%s285 + $0x51] sm:$0xff]
      %v391 = vld [vmem:[%s285 + $0x61] sm:$0xff]
      %v392 = vld [vmem:[%s285 + $0x71] sm:$0xff]
      %401 = vrot.lane.b32.xlu0 %v385, 20
      %v402 = vpop.permute.xlu0 %401
      %403 = vrot.lane.b32.xlu0 %v386, 20
      %v404 = vpop.permute.xlu0 %403
      %405 = vrot.lane.b32.xlu0 %v387, 20
      %v406 = vpop.permute.xlu0 %405
      %407 = vrot.lane.b32.xlu0 %v388, 20
      %v408 = vpop.permute.xlu0 %407
      %409 = vrot.lane.b32.xlu0 %v389, 20
      %v410 = vpop.permute.xlu0 %409
      %411 = vrot.lane.b32.xlu0 %v390, 20
      %v412 = vpop.permute.xlu0 %411
      %413 = vrot.lane.b32.xlu0 %v391, 20
      %v414 = vpop.permute.xlu0 %413
      %415 = vrot.lane.b32.xlu0 %v392, 20
      %v416 = vpop.permute.xlu0 %415
      %vm425 = vcmask 195744
      %426 = vst.msk [vmem:[#allocation2] sm:$0xff] %vm425, %v402
      %427 = vst.msk [vmem:[#allocation2 + $0x8] sm:$0xff] %vm425, %v404
      %428 = vst.msk [vmem:[#allocation2 + $0x10] sm:$0xff] %vm425, %v406
      %429 = vst.msk [vmem:[#allocation2 + $0x18] sm:$0xff] %vm425, %v408
      %430 = vst.msk [vmem:[#allocation2 + $0x20] sm:$0xff] %vm425, %v410
      %431 = vst.msk [vmem:[#allocation2 + $0x28] sm:$0xff] %vm425, %v412
      %432 = vst.msk [vmem:[#allocation2 + $0x30] sm:$0xff] %vm425, %v414
      %433 = vst.msk [vmem:[#allocation2 + $0x38] sm:$0xff] %vm425, %v416
      %s434 = scalar_lea.vmem %s164, 16
      %v435 = vld [vmem:[%s434] sm:$0xff]
      %v436 = vld [vmem:[%s434 + $0x10] sm:$0xff]
      %v437 = vld [vmem:[%s434 + $0x20] sm:$0xff]
      %v438 = vld [vmem:[%s434 + $0x30] sm:$0xff]
      %v439 = vld [vmem:[%s434 + $0x40] sm:$0xff]
      %v440 = vld [vmem:[%s434 + $0x50] sm:$0xff]
      %v441 = vld [vmem:[%s434 + $0x60] sm:$0xff]
      %v442 = vld [vmem:[%s434 + $0x70] sm:$0xff]
      %451 = vrot.lane.b32.xlu0 %v435, 24
      %v452 = vpop.permute.xlu0 %451
      %453 = vrot.lane.b32.xlu0 %v436, 24
      %v454 = vpop.permute.xlu0 %453
      %455 = vrot.lane.b32.xlu0 %v437, 24
      %v456 = vpop.permute.xlu0 %455
      %457 = vrot.lane.b32.xlu0 %v438, 24
      %v458 = vpop.permute.xlu0 %457
      %459 = vrot.lane.b32.xlu0 %v439, 24
      %v460 = vpop.permute.xlu0 %459
      %461 = vrot.lane.b32.xlu0 %v440, 24
      %v462 = vpop.permute.xlu0 %461
      %463 = vrot.lane.b32.xlu0 %v441, 24
      %v464 = vpop.permute.xlu0 %463
      %465 = vrot.lane.b32.xlu0 %v442, 24
      %v466 = vpop.permute.xlu0 %465
      %vm475 = vcmask 228544
      %476 = vst.msk [vmem:[#allocation2] sm:$0xff] %vm475, %v452
      %477 = vst.msk [vmem:[#allocation2 + $0x8] sm:$0xff] %vm475, %v454
      %478 = vst.msk [vmem:[#allocation2 + $0x10] sm:$0xff] %vm475, %v456
      %479 = vst.msk [vmem:[#allocation2 + $0x18] sm:$0xff] %vm475, %v458
      %480 = vst.msk [vmem:[#allocation2 + $0x20] sm:$0xff] %vm475, %v460
      %481 = vst.msk [vmem:[#allocation2 + $0x28] sm:$0xff] %vm475, %v462
      %482 = vst.msk [vmem:[#allocation2 + $0x30] sm:$0xff] %vm475, %v464
      %483 = vst.msk [vmem:[#allocation2 + $0x38] sm:$0xff] %vm475, %v466
      %s484 = scalar_lea.vmem %s164, 160
      %v485 = vld [vmem:[%s484] sm:$0xff]
      %v486 = vld [vmem:[%s484 + $0x10] sm:$0xff]
      %v487 = vld [vmem:[%s484 + $0x20] sm:$0xff]
      %v488 = vld [vmem:[%s484 + $0x30] sm:$0xff]
      %v489 = vld [vmem:[%s484 + $0x40] sm:$0xff]
      %v490 = vld [vmem:[%s484 + $0x50] sm:$0xff]
      %v491 = vld [vmem:[%s484 + $0x60] sm:$0xff]
      %v492 = vld [vmem:[%s484 + $0x70] sm:$0xff]
      %501 = vrot.lane.b32.xlu0 %v485, 28
      %v502 = vpop.permute.xlu0 %501
      %503 = vrot.lane.b32.xlu0 %v486, 28
      %v504 = vpop.permute.xlu0 %503
      %505 = vrot.lane.b32.xlu0 %v487, 28
      %v506 = vpop.permute.xlu0 %505
      %507 = vrot.lane.b32.xlu0 %v488, 28
      %v508 = vpop.permute.xlu0 %507
      %509 = vrot.lane.b32.xlu0 %v489, 28
      %v510 = vpop.permute.xlu0 %509
      %511 = vrot.lane.b32.xlu0 %v490, 28
      %v512 = vpop.permute.xlu0 %511
      %513 = vrot.lane.b32.xlu0 %v491, 28
      %v514 = vpop.permute.xlu0 %513
      %515 = vrot.lane.b32.xlu0 %v492, 28
      %v516 = vpop.permute.xlu0 %515
      %vm525 = vcmask 261344
      %526 = vst.msk [vmem:[#allocation2] sm:$0xff] %vm525, %v502
      %527 = vst.msk [vmem:[#allocation2 + $0x8] sm:$0xff] %vm525, %v504
      %528 = vst.msk [vmem:[#allocation2 + $0x10] sm:$0xff] %vm525, %v506
      %529 = vst.msk [vmem:[#allocation2 + $0x18] sm:$0xff] %vm525, %v508
      %530 = vst.msk [vmem:[#allocation2 + $0x20] sm:$0xff] %vm525, %v510
      %531 = vst.msk [vmem:[#allocation2 + $0x28] sm:$0xff] %vm525, %v512
      %532 = vst.msk [vmem:[#allocation2 + $0x30] sm:$0xff] %vm525, %v514
      %533 = vst.msk [vmem:[#allocation2 + $0x38] sm:$0xff] %vm525, %v516
      %v534 = vld [vmem:[%s434 + $0x1] sm:$0xff]
      %v535 = vld [vmem:[%s434 + $0x11] sm:$0xff]
      %v536 = vld [vmem:[%s434 + $0x21] sm:$0xff]
      %v537 = vld [vmem:[%s434 + $0x31] sm:$0xff]
      %v538 = vld [vmem:[%s434 + $0x41] sm:$0xff]
      %v539 = vld [vmem:[%s434 + $0x51] sm:$0xff]
      %v540 = vld [vmem:[%s434 + $0x61] sm:$0xff]
      %v541 = vld [vmem:[%s434 + $0x71] sm:$0xff]
      %550 = vrot.lane.b32.xlu0 %v534, 32
      %v551 = vpop.permute.xlu0 %550
      %552 = vrot.lane.b32.xlu0 %v535, 32
      %v553 = vpop.permute.xlu0 %552
      %554 = vrot.lane.b32.xlu0 %v536, 32
      %v555 = vpop.permute.xlu0 %554
      %556 = vrot.lane.b32.xlu0 %v537, 32
      %v557 = vpop.permute.xlu0 %556
      %558 = vrot.lane.b32.xlu0 %v538, 32
      %v559 = vpop.permute.xlu0 %558
      %560 = vrot.lane.b32.xlu0 %v539, 32
      %v561 = vpop.permute.xlu0 %560
      %562 = vrot.lane.b32.xlu0 %v540, 32
      %v563 = vpop.permute.xlu0 %562
      %564 = vrot.lane.b32.xlu0 %v541, 32
      %v565 = vpop.permute.xlu0 %564
      %vm574 = vcmask 294144
      %575 = vst.msk [vmem:[#allocation2] sm:$0xff] %vm574, %v551
      %576 = vst.msk [vmem:[#allocation2 + $0x8] sm:$0xff] %vm574, %v553
      %577 = vst.msk [vmem:[#allocation2 + $0x10] sm:$0xff] %vm574, %v555
      %578 = vst.msk [vmem:[#allocation2 + $0x18] sm:$0xff] %vm574, %v557
      %579 = vst.msk [vmem:[#allocation2 + $0x20] sm:$0xff] %vm574, %v559
      %580 = vst.msk [vmem:[#allocation2 + $0x28] sm:$0xff] %vm574, %v561
      %581 = vst.msk [vmem:[#allocation2 + $0x30] sm:$0xff] %vm574, %v563
      %582 = vst.msk [vmem:[#allocation2 + $0x38] sm:$0xff] %vm574, %v565
      %v583 = vld [vmem:[#allocation2] sm:$0xff]
      %v584 = vld [vmem:[#allocation2 + $0x8] sm:$0xff]
      %v585 = vld [vmem:[#allocation2 + $0x10] sm:$0xff]
      %v586 = vld [vmem:[#allocation2 + $0x18] sm:$0xff]
      %v587 = vld [vmem:[#allocation2 + $0x20] sm:$0xff]
      %v588 = vld [vmem:[#allocation2 + $0x28] sm:$0xff]
      %v589 = vld [vmem:[#allocation2 + $0x30] sm:$0xff]
      %v590 = vld [vmem:[#allocation2 + $0x38] sm:$0xff]
      %v591 = vld [vmem:[%s1] sm:$0xff]
      %v592 = vld [vmem:[%s2] sm:$0xff]
      %594 = vset.pattern.permute.xlu0 0
      %595 = vperm.xlu0 %594, %v592
      %v596 = vpop.permute.xlu0 %595
      %vm598 = vcmask 293888
      %v600 = vsel %vm598, %v591, 0
      %v603 = vsel %vm598, %v583, 0
      %v606 = vsel %vm598, %v584, 0
      %v609 = vsel %vm598, %v585, 0
      %v612 = vsel %vm598, %v586, 0
      %v615 = vsel %vm598, %v587, 0
      %v618 = vsel %vm598, %v588, 0
      %v621 = vsel %vm598, %v589, 0
      %v624 = vsel %vm598, %v590, 0
      %626 = vmatprep.subr.mxu0 0.0
      %627 = vmatpush1.xpose.msra.mxu0 %v603
      %628 = vmatprep.subr.mxu0 0.0
      %629 = vmatpush1.xpose.msra.mxu0 %v606
      %630 = vmatprep.subr.mxu0 0.0
      %631 = vmatpush1.xpose.msra.mxu0 %v609
      %632 = vmatprep.subr.mxu0 0.0
      %633 = vmatpush1.xpose.msra.mxu0 %v612
      %634 = vmatprep.subr.mxu0 0.0
      %635 = vmatpush1.xpose.msra.mxu0 %v615
      %636 = vmatprep.subr.mxu0 0.0
      %637 = vmatpush1.xpose.msra.mxu0 %v618
      %638 = vmatprep.subr.mxu0 0.0
      %639 = vmatpush1.xpose.msra.mxu0 %v621
      %640 = vmatprep.subr.mxu0 0.0
      %641 = vmatpush1.xpose.msra.mxu0 %v624
      %642 = vmatprep.subr.mxu0 0.0
      %643 = vmatpush1.xpose.msra.mxu0 0.0
      %644 = vmatprep.subr.mxu0 0.0
      %645 = vmatpush1.xpose.msra.mxu0 0.0
      %646 = vmatprep.subr.mxu0 0.0
      %647 = vmatpush1.xpose.msra.mxu0 0.0
      %648 = vmatprep.subr.mxu0 0.0
      %649 = vmatpush1.xpose.msra.mxu0 0.0
      %650 = vmatprep.subr.mxu0 0.0
      %651 = vmatpush1.xpose.msra.mxu0 0.0
      %652 = vmatprep.subr.mxu0 0.0
      %653 = vmatpush1.xpose.msra.mxu0 0.0
      %654 = vmatprep.subr.mxu0 0.0
      %655 = vmatpush1.xpose.msra.mxu0 0.0
      %656 = vmatprep.subr.mxu0 0.0
      %657 = vmatpush1.xpose.msra.mxu0 0.0
      %658 = vmatprep.subr.mxu0 0.0
      %659 = vmatpush1.xpose.msra.mxu0 0.0
      %660 = vmatprep.subr.mxu0 0.0
      %661 = vmatpush1.xpose.msra.mxu0 0.0
      %662 = vmatprep.subr.mxu0 0.0
      %663 = vmatpush1.xpose.msra.mxu0 0.0
      %664 = vmatprep.subr.mxu0 0.0
      %665 = vmatpush1.xpose.msra.mxu0 0.0
      %666 = vmatprep.subr.mxu0 0.0
      %667 = vmatpush1.xpose.msra.mxu0 0.0
      %668 = vmatprep.subr.mxu0 0.0
      %669 = vmatpush1.xpose.msra.mxu0 0.0
      %670 = vmatprep.subr.mxu0 0.0
      %671 = vmatpush1.xpose.msra.mxu0 0.0
      %672 = vmatprep.subr.mxu0 0.0
      %673 = vmatpush1.xpose.msra.mxu0 0.0
      %674 = vmatprep.subr.mxu0 0.0
      %675 = vmatpush1.xpose.msra.mxu0 0.0
      %676 = vmatprep.subr.mxu0 0.0
      %677 = vmatpush1.xpose.msra.mxu0 0.0
      %678 = vmatprep.subr.mxu0 0.0
      %679 = vmatpush1.xpose.msra.mxu0 0.0
      %680 = vmatprep.subr.mxu0 0.0
      %681 = vmatpush1.xpose.msra.mxu0 0.0
      %682 = vmatprep.subr.mxu0 0.0
      %683 = vmatpush1.xpose.msra.mxu0 0.0
      %684 = vmatprep.subr.mxu0 0.0
      %685 = vmatpush1.xpose.msra.mxu0 0.0
      %686 = vmatprep.subr.mxu0 0.0
      %687 = vmatpush1.xpose.msra.mxu0 0.0
      %688 = vmatprep.subr.mxu0 0.0
      %689 = vmatpush1.xpose.msra.mxu0 0.0
      %690 = vmatprep.mubr.f32.mxu0 0.0
      %691 = vmatmul.mubr.f32.gmra.mrb[0].mxu0 %v600
      %v692 = vpop.f32.mrb[0].mxu0
      %v693 = vadd.f32 %v596, %v692
      %v694 = vpop.f32.mrb[0].mxu0
      %695 = vdwg.mxu0
      %vm696 = vcmask 523264
      %697 = vst.msk [vmem:[%s168] sm:$0xff] %vm696, %v693
      %p698 = scmp.lt.s32.totalorder %s14, 1
      %s699 = scalar_select %p698, %s14, 1
      %s700 = smul.addr %s699, 8
      %s701 = scalar_lea.vmem %s3, %s700
      // Predicated region
      $region33: #{dsconv2d_forward.1} parent=31 // pred_check
        %p702 = pneg %p100
      $region34: #{dsconv2d_forward.1} parent=31 // pred_check_branch
        %704 = sbr.rel (%p702) target = $region36
      $region35: #{dsconv2d_forward.1} parent=31 // pred_region
        _
      $region36: #{dsconv2d_forward.1} parent=31 // pred_fallthru
        _
    $region32: #{dsconv2d_forward.1} parent=5 // pred_fallthru
      _
    %p705 = scmp.le.s32.totalorder 2, %s9
    // Predicated region
    $region37: #{dsconv2d_forward.1} parent=5 // pred_check
      %p706 = pneg %p705
    $region38: #{dsconv2d_forward.1} parent=5 // pred_check_branch
      %708 = sbr.rel (%p706) target = $region40
    $region39: #{dsconv2d_forward.1} parent=5 // pred_region
      %s709 = ssub.s32 %s9, 2
      // Predicated region
      $region41: #{dsconv2d_forward.1} parent=39 // pred_check
        %p710 = pneg %p106
      $region42: #{dsconv2d_forward.1} parent=39 // pred_check_branch
        %712 = sbr.rel (%p710) target = $region44
      $region43: #{dsconv2d_forward.1} parent=39 // pred_region
        %p713 = scmp.lt.s32.totalorder %s15, 1
        %s714 = scalar_select %p713, %s15, 1
        %s715 = smul.addr %s714, 8
        %s716 = scalar_lea.vmem %s3, %s715
      $region44: #{dsconv2d_forward.1} parent=39 // pred_fallthru
        _
    $region40: #{dsconv2d_forward.1} parent=5 // pred_fallthru
      _
  $region6: #{dsconv2d_forward.1} parent=0 // loop_footer
    %s13 = sadd.s32 1, %s9
  $region7: #{dsconv2d_forward.1} parent=0 // loop_footer_branch
    %8 = sbr.rel target = $region3
  $region8: #{dsconv2d_forward.1} parent=0 // loop_exit
    _

</llo_original>
